<compile_context>
chip_gen: v5e
topology: v5e:2x2
jax: 0.10.0
libtpu: 0.0.40
codegen_flags: <defaults>
</compile_context>

<pallas_src>
import functools

import jax
import jax.numpy as jnp
from jax.experimental import pallas as pl
from jax.experimental.pallas import tpu as pltpu


# ----------------------------------------------------------------------------
# Small helpers
# ----------------------------------------------------------------------------
def _round_up(x, m):
    return ((x + m - 1) // m) * m


def _pad2d(x, m_pad, n_pad):
    m, n = x.shape
    if m == m_pad and n == n_pad:
        return x
    return jnp.pad(x, ((0, m_pad - m), (0, n_pad - n)))


@functools.lru_cache(maxsize=1)
def _chip_plan():
    """Returns (vmem_capacity, vmem_budget, tile_target) for this generation."""
    vmem_cap = 64 << 20  # conservative (v7x) default
    try:
        info = pltpu.get_tpu_info()
        cap = int(getattr(info, "vmem_capacity_bytes", 0) or 0)
        if cap > 0:
            vmem_cap = cap
    except Exception:
        pass
    if vmem_cap >= (100 << 20):          # v5e / v6e: 128 MiB VMEM
        return vmem_cap, 100 << 20, 2048
    else:                                 # v7x: 64 MiB VMEM per TensorCore
        return vmem_cap, 44 << 20, 1024


def _choose_row_tile(m, target):
    """Largest tile <= target with >=2 row tiles and <=25% row padding; tiny
    inputs fall back to a single 16-aligned tile (native bf16 sublane tile)."""
    if m < 512:
        return max(16, _round_up(m, 16))
    t = target
    while t > 256 and (_round_up(m, t) // t < 2 or _round_up(m, t) * 4 > m * 5):
        t //= 2
    return t


# ----------------------------------------------------------------------------
# Generic fused tiled matmul kernel:  out = maybe_relu(A @ B + bias)
#   grid = (M tiles "parallel", K tiles "arbitrary"); f32 accumulator scratch.
#   When `b_resident`, B is a single VMEM-resident block sliced along K here.
# ----------------------------------------------------------------------------
def _fused_matmul_kernel(a_ref, b_ref, bias_ref, o_ref, acc_ref, *,
                         apply_relu, b_resident, tk):
    k = pl.program_id(1)

    @pl.when(k == 0)
    def _():
        acc_ref[...] = jnp.zeros_like(acc_ref)

    if b_resident:
        start = pl.multiple_of(k * tk, tk)
        b_blk = b_ref[pl.ds(start, tk), :]
    else:
        b_blk = b_ref[...]

    # bf16 x bf16 -> f32 accumulate on the MXU.
    acc_ref[...] += jnp.dot(a_ref[...], b_blk,
                            preferred_element_type=jnp.float32)

    @pl.when(k == pl.num_programs(1) - 1)
    def _():
        h = acc_ref[...] + bias_ref[...]
        if apply_relu:
            h = jnp.maximum(h, 0.0)
        o_ref[...] = h.astype(o_ref.dtype)


def fused_matmul(a, b, bias=None, *, apply_relu=False, out_dtype=jnp.float32,
                 return_padded=False, tm=None, tk=None):
    """out = maybe_relu(a @ b + bias), tiled on the MXU.

    a: [M, K]  b: [K, N]  bias: [N] or None.  MXU inputs are streamed as bf16
    (f32 accumulation).  Inputs that are already zero-padded to the tile
    geometry pass through without extra pad passes; with return_padded=True
    the padded [M_pad, N_pad] result is returned (for chaining layers).
    """
    m, k = a.shape
    k2, n = b.shape
    assert k == k2, (a.shape, b.shape)

    _, budget, tile_target = _chip_plan()

    n_p = _round_up(n, 128)
    if tm is None:
        tm = _choose_row_tile(m, tile_target)
    if tk is None:
        tk = tile_target if k >= tile_target else _round_up(k, 128)
        tk = min(tk, tile_target)
    k_p = _round_up(k, tk)
    m_p = _round_up(m, tm)
    out_bytes = jnp.dtype(out_dtype).itemsize

    def _footprint(b_res):
        b_blk = (k_p * n_p) if b_res else (tk * n_p)
        return (2 * tm * tk * 2          # A tiles (bf16, double buffered)
                + 2 * b_blk * 2          # B (bf16)
                + 2 * n_p * 4            # bias
                + 2 * tm * n_p * out_bytes
                + tm * n_p * 4)          # f32 accumulator scratch

    b_resident = _footprint(True) <= budget
    need = _footprint(b_resident)
    while need > budget and tm > 256:    # rare fallback for huge channel dims
        tm //= 2
        m_p = _round_up(m, tm)
        need = _footprint(b_resident)
    vmem_limit = int(min(budget, max(int(need * 1.25), 16 << 20)))

    a_p = _pad2d(a.astype(jnp.bfloat16), m_p, k_p)
    b_p = _pad2d(b.astype(jnp.bfloat16), k_p, n_p)
    bias_p = (jnp.zeros((1, n_p), jnp.float32) if bias is None
              else _pad2d(bias.reshape(1, -1).astype(jnp.float32), 1, n_p))

    grid = (m_p // tm, k_p // tk)

    if b_resident:
        b_spec = pl.BlockSpec((k_p, n_p), lambda i, kk: (0, 0))   # fetched once
    else:
        b_spec = pl.BlockSpec((tk, n_p), lambda i, kk: (kk, 0))

    out = pl.pallas_call(
        functools.partial(_fused_matmul_kernel, apply_relu=apply_relu,
                          b_resident=b_resident, tk=tk),
        out_shape=jax.ShapeDtypeStruct((m_p, n_p), out_dtype),
        grid=grid,
        in_specs=[
            pl.BlockSpec((tm, tk), lambda i, kk: (i, kk)),
            b_spec,
            pl.BlockSpec((1, n_p), lambda i, kk: (0, 0)),
        ],
        out_specs=pl.BlockSpec((tm, n_p), lambda i, kk: (i, 0)),
        scratch_shapes=[pltpu.VMEM((tm, n_p), jnp.float32)],
        compiler_params=pltpu.CompilerParams(
            dimension_semantics=("parallel", "arbitrary"),
            vmem_limit_bytes=vmem_limit,
        ),
    )(a_p, b_p, bias_p)

    if return_padded:
        return out
    return out[:m, :n]


# ----------------------------------------------------------------------------
# Dense normalized adjacency, built directly into its padded bf16 layout.
# GCNConv semantics: summed duplicate-edge messages (src -> dst), self loops,
# symmetric deg^{-1/2} normalization.  Padded rows/cols stay exactly zero.
# ----------------------------------------------------------------------------
def normalized_adjacency_padded(edge_index, num_nodes, n_pad,
                                out_dtype=jnp.bfloat16):
    src, dst = edge_index[0], edge_index[1]
    a = jnp.zeros((n_pad, n_pad), dtype=jnp.float32)
    a = a.at[dst, src].add(1.0)                      # row = dst, col = src
    diag = jnp.arange(num_nodes)
    a = a.at[diag, diag].add(1.0)                    # add_self_loops
    deg = a.sum(axis=1)
    d_inv_sqrt = jnp.where(deg > 0.0,
                           jax.lax.rsqrt(jnp.maximum(deg, 1e-12)), 0.0)
    # XLA fuses the two broadcast multiplies + cast into one pass over A.
    return (a * d_inv_sqrt[:, None] * d_inv_sqrt[None, :]).astype(out_dtype)


# ----------------------------------------------------------------------------
# Model (forward == Encoder forward: k stacked GCN layers + ReLU activation)
# ----------------------------------------------------------------------------
class PallasGCLModel:
    def __init__(self, in_channels, out_channels, num_proj_hidden,
                 k=2, tau=0.5, key=jax.random.PRNGKey(0)):
        self.k = k
        self.tau = tau
        keys = jax.random.split(key, 2 * k + 4)

        # Encoder conv dims: in -> 2*out -> ... -> out (as in Encoder.__init__).
        if k == 1:
            dims = [(in_channels, out_channels)]
        else:
            dims = [(in_channels, 2 * out_channels)]
            for _ in range(1, k - 1):
                dims.append((2 * out_channels, 2 * out_channels))
            dims.append((2 * out_channels, out_channels))

        self.conv_w = []
        self.conv_b = []
        for li, (cin, cout) in enumerate(dims):
            scale = 1.0 / jnp.sqrt(jnp.float32(cin))
            self.conv_w.append(
                jax.random.normal(keys[2 * li], (cin, cout), jnp.float32) * scale)
            self.conv_b.append(jnp.zeros((cout,), jnp.float32))

        # fc1 / fc2 (projection head; not used by Model.forward, kept for parity).
        self.fc1_w = jax.random.normal(keys[-4], (out_channels, num_proj_hidden),
                                       jnp.float32) / jnp.sqrt(jnp.float32(out_channels))
        self.fc1_b = jnp.zeros((num_proj_hidden,), jnp.float32)
        self.fc2_w = jax.random.normal(keys[-3], (num_proj_hidden, out_channels),
                                       jnp.float32) / jnp.sqrt(jnp.float32(num_proj_hidden))
        self.fc2_b = jnp.zeros((out_channels,), jnp.float32)

    def forward(self, x, edge_index):
        n = x.shape[0]
        _, _, tile_target = _chip_plan()
        t = _choose_row_tile(n, tile_target)     # propagate-matmul tile (tm==tk)
        n_pad = _round_up(n, t)

        # A_hat built once, directly into padded bf16 [n_pad, n_pad].
        a_hat = normalized_adjacency_padded(edge_index, n, n_pad)

        c_in0 = x.shape[1]
        h = _pad2d(x.astype(jnp.bfloat16), n_pad, _round_up(c_in0, 128))

        for i in range(self.k):
            w, b = self.conv_w[i], self.conv_b[i]
            c_i, c_o = w.shape
            ci_p, co_p = _round_up(c_i, 128), _round_up(c_o, 128)
            w_p = _pad2d(w, ci_p, co_p)
            b_p = jnp.pad(b, (0, co_p - c_o))
            last = (i == self.k - 1)
            out_dt = jnp.float32 if last else jnp.bfloat16

            if c_i < c_o:
                # Propagate at the narrower feature width first: (A_hat @ X) @ W.
                hx = fused_matmul(a_hat, h, out_dtype=jnp.bfloat16,
                                  return_padded=True, tm=t, tk=t)
                h = fused_matmul(hx, w_p, b_p, apply_relu=True, out_dtype=out_dt,
                                 return_padded=True, tm=t)
            else:
                # Transform first: A_hat @ (X @ W).
                xw = fused_matmul(h, w_p, out_dtype=jnp.bfloat16,
                                  return_padded=True, tm=t)
                h = fused_matmul(a_hat, xw, b_p, apply_relu=True, out_dtype=out_dt,
                                 return_padded=True, tm=t, tk=t)

        c_out_last = self.conv_w[-1].shape[1]
        return h[:n, :c_out_last].astype(jnp.float32)


# ----------------------------------------------------------------------------
# Reference (pure JAX, f32) for sanity checking the kernels.
# ----------------------------------------------------------------------------
def forward_ref(model, x, edge_index):
    n = x.shape[0]
    a_hat = normalized_adjacency_padded(edge_index, n, n, out_dtype=jnp.float32)
    h = x.astype(jnp.float32)
    for i in range(model.k):
        h = jnp.maximum(a_hat @ (h @ model.conv_w[i]) + model.conv_b[i], 0.0)
    return h


if __name__ == "__main__":
    key = jax.random.PRNGKey(0)
    k_x, k_e, k_m = jax.random.split(key, 3)

    num_nodes = 8
    in_channels = 16
    num_hidden = 32        # encoder out_channels
    num_proj_hidden = 32
    num_edges = 24

    x = jax.random.normal(k_x, (num_nodes, in_channels), jnp.float32)
    edge_index = jax.random.randint(k_e, (2, num_edges), 0, num_nodes,
                                    dtype=jnp.int32)

    model = PallasGCLModel(in_channels, num_hidden, num_proj_hidden,
                           k=2, tau=0.5, key=k_m)

    fwd = jax.jit(model.forward)
    out = jax.block_until_ready(fwd(x, edge_index))

    ref = forward_ref(model, x, edge_index)
    assert out.shape == (num_nodes, num_hidden)
    # Loose tolerance: MXU inputs are bf16 (f32 accumulation) vs the f32 ref.
    assert jnp.allclose(out, ref, atol=5e-2, rtol=5e-2), (
        float(jnp.max(jnp.abs(out - ref))))

    print("KERNEL_OK")
</pallas_src>

<mosaic_0001>
module attributes {stable_mosaic.version = 11 : i64} {
  func.func @_fused_matmul_kernel(%arg0: i32, %arg1: i32, %arg2: memref<16x16xbf16, #tpu.memory_space<vmem>>, %arg3: memref<16x128xbf16, #tpu.memory_space<vmem>>, %arg4: memref<1x128xf32, #tpu.memory_space<vmem>>, %arg5: memref<16x128xbf16, #tpu.memory_space<vmem>>, %arg6: memref<16x128xf32, #tpu.memory_space<vmem>>) attributes {dimension_semantics = [#tpu.dimension_semantics<parallel>, #tpu.dimension_semantics<arbitrary>], iteration_bounds = array<i64: 1, 1>, scalar_prefetch = 0 : i64, scratch_operands = 1 : i64, tpu.core_type = #tpu.core_type<tc>, window_params = [{transform_indices = @transform_0, window_bounds = array<i64: 16, 16>}, {pipeline_mode = #tpu.pipeline_mode<synchronous>, transform_indices = @transform_1, window_bounds = array<i64: 16, 128>}, {pipeline_mode = #tpu.pipeline_mode<synchronous>, transform_indices = @transform_2, window_bounds = array<i64: 1, 128>}, {transform_indices = @transform_3, window_bounds = array<i64: 16, 128>}]} {
    %c0_i32 = arith.constant 0 : i32
    %0 = arith.cmpi eq, %arg1, %c0_i32 : i32
    %1 = arith.extui %0 : i1 to i32
    %c0_i32_0 = arith.constant 0 : i32
    %2 = arith.cmpi ne, %1, %c0_i32_0 : i32
    scf.if %2 {
      %cst_9 = arith.constant 0.000000e+00 : f32
      %15 = vector.broadcast %cst_9 : f32 to vector<16x128xf32>
      %c0_10 = arith.constant 0 : index
      %c0_11 = arith.constant 0 : index
      %16 = vector.load %arg6[%c0_10, %c0_11] : memref<16x128xf32, #tpu.memory_space<vmem>>, vector<16x128xf32>
      tpu.vector_store %arg6[%c0_10, %c0_11], %15 {strides = array<i32>} : memref<16x128xf32, #tpu.memory_space<vmem>>, vector<16x128xf32>,
    } else {
    }
    %c16_i32 = arith.constant 16 : i32
    %3 = arith.muli %arg1, %c16_i32 : i32
    %4 = tpu.assume_multiple %3, 16 : i32
    %5 = arith.index_cast %4 : i32 to index
    %c0 = arith.constant 0 : index
    %6 = vector.load %arg3[%5, %c0] : memref<16x128xbf16, #tpu.memory_space<vmem>>, vector<16x128xbf16>
    %c0_1 = arith.constant 0 : index
    %c0_2 = arith.constant 0 : index
    %7 = vector.load %arg6[%c0_1, %c0_2] : memref<16x128xf32, #tpu.memory_space<vmem>>, vector<16x128xf32>
    %c0_3 = arith.constant 0 : index
    %c0_4 = arith.constant 0 : index
    %8 = vector.load %arg2[%c0_3, %c0_4] : memref<16x16xbf16, #tpu.memory_space<vmem>>, vector<16x16xbf16>
    %cst = arith.constant dense<0.000000e+00> : vector<16x128xf32>
    %9 = tpu.matmul %8, %6, %cst {dimension_numbers = #tpu.dot_dimension_numbers<[1], [0], [0], [1], [0, 0, 1, 1], [], []>} : vector<16x16xbf16>, vector<16x128xbf16>, vector<16x128xf32> -> vector<16x128xf32>
    %10 = arith.addf %7, %9 : vector<16x128xf32>
    %c0_5 = arith.constant 0 : index
    %c0_6 = arith.constant 0 : index
    %11 = vector.load %arg6[%c0_5, %c0_6] : memref<16x128xf32, #tpu.memory_space<vmem>>, vector<16x128xf32>
    tpu.vector_store %arg6[%c0_5, %c0_6], %10 {strides = array<i32>} : memref<16x128xf32, #tpu.memory_space<vmem>>, vector<16x128xf32>,
    %c0_i32_7 = arith.constant 0 : i32
    %12 = arith.cmpi eq, %arg1, %c0_i32_7 : i32
    %13 = arith.extui %12 : i1 to i32
    %c0_i32_8 = arith.constant 0 : i32
    %14 = arith.cmpi ne, %13, %c0_i32_8 : i32
    scf.if %14 {
      %c0_9 = arith.constant 0 : index
      %c0_10 = arith.constant 0 : index
      %15 = vector.load %arg6[%c0_9, %c0_10] : memref<16x128xf32, #tpu.memory_space<vmem>>, vector<16x128xf32>
      %c0_11 = arith.constant 0 : index
      %c0_12 = arith.constant 0 : index
      %16 = vector.load %arg4[%c0_11, %c0_12] : memref<1x128xf32, #tpu.memory_space<vmem>>, vector<1x128xf32>
      %17 = vector.broadcast %16 : vector<1x128xf32> to vector<16x128xf32>
      %18 = arith.addf %15, %17 : vector<16x128xf32>
      %19 = arith.truncf %18 : vector<16x128xf32> to vector<16x128xbf16>
      %c0_13 = arith.constant 0 : index
      %c0_14 = arith.constant 0 : index
      %20 = vector.load %arg5[%c0_13, %c0_14] : memref<16x128xbf16, #tpu.memory_space<vmem>>, vector<16x128xbf16>
      tpu.vector_store %arg5[%c0_13, %c0_14], %19 {strides = array<i32>} : memref<16x128xbf16, #tpu.memory_space<vmem>>, vector<16x128xbf16>,
    } else {
    }
    return
  }
  func.func @transform_0(%arg0: i32, %arg1: i32) -> (i32, i32) {
    %c0_i32 = arith.constant 0 : i32
    return %arg0, %arg1 : i32, i32
  }
  func.func @transform_1(%arg0: i32, %arg1: i32) -> (i32, i32) {
    %c0_i32 = arith.constant 0 : i32
    %c0_i32_0 = arith.constant 0 : i32
    %c0_i32_1 = arith.constant 0 : i32
    return %c0_i32, %c0_i32_0 : i32, i32
  }
  func.func @transform_2(%arg0: i32, %arg1: i32) -> (i32, i32) {
    %c0_i32 = arith.constant 0 : i32
    %c0_i32_0 = arith.constant 0 : i32
    %c0_i32_1 = arith.constant 0 : i32
    return %c0_i32, %c0_i32_0 : i32, i32
  }
  func.func @transform_3(%arg0: i32, %arg1: i32) -> (i32, i32) {
    %c0_i32 = arith.constant 0 : i32
    %c0_i32_0 = arith.constant 0 : i32
    return %arg0, %c0_i32 : i32, i32
  }
}

module attributes {stable_mosaic.version = 11 : i64} {
  func.func @_fused_matmul_kernel(%arg0: i32, %arg1: i32, %arg2: memref<16x128xbf16, #tpu.memory_space<vmem>>, %arg3: memref<128x128xbf16, #tpu.memory_space<vmem>>, %arg4: memref<1x128xf32, #tpu.memory_space<vmem>>, %arg5: memref<16x128xbf16, #tpu.memory_space<vmem>>, %arg6: memref<16x128xf32, #tpu.memory_space<vmem>>) attributes {dimension_semantics = [#tpu.dimension_semantics<parallel>, #tpu.dimension_semantics<arbitrary>], iteration_bounds = array<i64: 1, 1>, scalar_prefetch = 0 : i64, scratch_operands = 1 : i64, tpu.core_type = #tpu.core_type<tc>, window_params = [{transform_indices = @transform_0, window_bounds = array<i64: 16, 128>}, {pipeline_mode = #tpu.pipeline_mode<synchronous>, transform_indices = @transform_1, window_bounds = array<i64: 128, 128>}, {pipeline_mode = #tpu.pipeline_mode<synchronous>, transform_indices = @transform_2, window_bounds = array<i64: 1, 128>}, {transform_indices = @transform_3, window_bounds = array<i64: 16, 128>}]} {
    %c0_i32 = arith.constant 0 : i32
    %0 = arith.cmpi eq, %arg1, %c0_i32 : i32
    %1 = arith.extui %0 : i1 to i32
    %c0_i32_0 = arith.constant 0 : i32
    %2 = arith.cmpi ne, %1, %c0_i32_0 : i32
    scf.if %2 {
      %cst_9 = arith.constant 0.000000e+00 : f32
      %15 = vector.broadcast %cst_9 : f32 to vector<16x128xf32>
      %c0_10 = arith.constant 0 : index
      %c0_11 = arith.constant 0 : index
      %16 = vector.load %arg6[%c0_10, %c0_11] : memref<16x128xf32, #tpu.memory_space<vmem>>, vector<16x128xf32>
      tpu.vector_store %arg6[%c0_10, %c0_11], %15 {strides = array<i32>} : memref<16x128xf32, #tpu.memory_space<vmem>>, vector<16x128xf32>,
    } else {
    }
    %c128_i32 = arith.constant 128 : i32
    %3 = arith.muli %arg1, %c128_i32 : i32
    %4 = tpu.assume_multiple %3, 128 : i32
    %5 = arith.index_cast %4 : i32 to index
    %c0 = arith.constant 0 : index
    %6 = vector.load %arg3[%5, %c0] : memref<128x128xbf16, #tpu.memory_space<vmem>>, vector<128x128xbf16>
    %c0_1 = arith.constant 0 : index
    %c0_2 = arith.constant 0 : index
    %7 = vector.load %arg6[%c0_1, %c0_2] : memref<16x128xf32, #tpu.memory_space<vmem>>, vector<16x128xf32>
    %c0_3 = arith.constant 0 : index
    %c0_4 = arith.constant 0 : index
    %8 = vector.load %arg2[%c0_3, %c0_4] : memref<16x128xbf16, #tpu.memory_space<vmem>>, vector<16x128xbf16>
    %cst = arith.constant dense<0.000000e+00> : vector<16x128xf32>
    %9 = tpu.matmul %8, %6, %cst {dimension_numbers = #tpu.dot_dimension_numbers<[1], [0], [0], [1], [0, 0, 1, 1], [], []>} : vector<16x128xbf16>, vector<128x128xbf16>, vector<16x128xf32> -> vector<16x128xf32>
    %10 = arith.addf %7, %9 : vector<16x128xf32>
    %c0_5 = arith.constant 0 : index
    %c0_6 = arith.constant 0 : index
    %11 = vector.load %arg6[%c0_5, %c0_6] : memref<16x128xf32, #tpu.memory_space<vmem>>, vector<16x128xf32>
    tpu.vector_store %arg6[%c0_5, %c0_6], %10 {strides = array<i32>} : memref<16x128xf32, #tpu.memory_space<vmem>>, vector<16x128xf32>,
    %c0_i32_7 = arith.constant 0 : i32
    %12 = arith.cmpi eq, %arg1, %c0_i32_7 : i32
    %13 = arith.extui %12 : i1 to i32
    %c0_i32_8 = arith.constant 0 : i32
    %14 = arith.cmpi ne, %13, %c0_i32_8 : i32
    scf.if %14 {
      %c0_9 = arith.constant 0 : index
      %c0_10 = arith.constant 0 : index
      %15 = vector.load %arg6[%c0_9, %c0_10] : memref<16x128xf32, #tpu.memory_space<vmem>>, vector<16x128xf32>
      %c0_11 = arith.constant 0 : index
      %c0_12 = arith.constant 0 : index
      %16 = vector.load %arg4[%c0_11, %c0_12] : memref<1x128xf32, #tpu.memory_space<vmem>>, vector<1x128xf32>
      %17 = vector.broadcast %16 : vector<1x128xf32> to vector<16x128xf32>
      %18 = arith.addf %15, %17 : vector<16x128xf32>
      %cst_13 = arith.constant 0.000000e+00 : f32
      %19 = vector.broadcast %cst_13 : f32 to vector<16x128xf32>
      %20 = arith.maximumf %18, %19 : vector<16x128xf32>
      %21 = arith.truncf %20 : vector<16x128xf32> to vector<16x128xbf16>
      %c0_14 = arith.constant 0 : index
      %c0_15 = arith.constant 0 : index
      %22 = vector.load %arg5[%c0_14, %c0_15] : memref<16x128xbf16, #tpu.memory_space<vmem>>, vector<16x128xbf16>
      tpu.vector_store %arg5[%c0_14, %c0_15], %21 {strides = array<i32>} : memref<16x128xbf16, #tpu.memory_space<vmem>>, vector<16x128xbf16>,
    } else {
    }
    return
  }
  func.func @transform_0(%arg0: i32, %arg1: i32) -> (i32, i32) {
    %c0_i32 = arith.constant 0 : i32
    return %arg0, %arg1 : i32, i32
  }
  func.func @transform_1(%arg0: i32, %arg1: i32) -> (i32, i32) {
    %c0_i32 = arith.constant 0 : i32
    %c0_i32_0 = arith.constant 0 : i32
    %c0_i32_1 = arith.constant 0 : i32
    return %c0_i32, %c0_i32_0 : i32, i32
  }
  func.func @transform_2(%arg0: i32, %arg1: i32) -> (i32, i32) {
    %c0_i32 = arith.constant 0 : i32
    %c0_i32_0 = arith.constant 0 : i32
    %c0_i32_1 = arith.constant 0 : i32
    return %c0_i32, %c0_i32_0 : i32, i32
  }
  func.func @transform_3(%arg0: i32, %arg1: i32) -> (i32, i32) {
    %c0_i32 = arith.constant 0 : i32
    %c0_i32_0 = arith.constant 0 : i32
    return %arg0, %c0_i32 : i32, i32
  }
}

module attributes {stable_mosaic.version = 11 : i64} {
  func.func @_fused_matmul_kernel(%arg0: i32, %arg1: i32, %arg2: memref<16x128xbf16, #tpu.memory_space<vmem>>, %arg3: memref<128x128xbf16, #tpu.memory_space<vmem>>, %arg4: memref<1x128xf32, #tpu.memory_space<vmem>>, %arg5: memref<16x128xbf16, #tpu.memory_space<vmem>>, %arg6: memref<16x128xf32, #tpu.memory_space<vmem>>) attributes {dimension_semantics = [#tpu.dimension_semantics<parallel>, #tpu.dimension_semantics<arbitrary>], iteration_bounds = array<i64: 1, 1>, scalar_prefetch = 0 : i64, scratch_operands = 1 : i64, tpu.core_type = #tpu.core_type<tc>, window_params = [{transform_indices = @transform_0, window_bounds = array<i64: 16, 128>}, {pipeline_mode = #tpu.pipeline_mode<synchronous>, transform_indices = @transform_1, window_bounds = array<i64: 128, 128>}, {pipeline_mode = #tpu.pipeline_mode<synchronous>, transform_indices = @transform_2, window_bounds = array<i64: 1, 128>}, {transform_indices = @transform_3, window_bounds = array<i64: 16, 128>}]} {
    %c0_i32 = arith.constant 0 : i32
    %0 = arith.cmpi eq, %arg1, %c0_i32 : i32
    %1 = arith.extui %0 : i1 to i32
    %c0_i32_0 = arith.constant 0 : i32
    %2 = arith.cmpi ne, %1, %c0_i32_0 : i32
    scf.if %2 {
      %cst_9 = arith.constant 0.000000e+00 : f32
      %15 = vector.broadcast %cst_9 : f32 to vector<16x128xf32>
      %c0_10 = arith.constant 0 : index
      %c0_11 = arith.constant 0 : index
      %16 = vector.load %arg6[%c0_10, %c0_11] : memref<16x128xf32, #tpu.memory_space<vmem>>, vector<16x128xf32>
      tpu.vector_store %arg6[%c0_10, %c0_11], %15 {strides = array<i32>} : memref<16x128xf32, #tpu.memory_space<vmem>>, vector<16x128xf32>,
    } else {
    }
    %c128_i32 = arith.constant 128 : i32
    %3 = arith.muli %arg1, %c128_i32 : i32
    %4 = tpu.assume_multiple %3, 128 : i32
    %5 = arith.index_cast %4 : i32 to index
    %c0 = arith.constant 0 : index
    %6 = vector.load %arg3[%5, %c0] : memref<128x128xbf16, #tpu.memory_space<vmem>>, vector<128x128xbf16>
    %c0_1 = arith.constant 0 : index
    %c0_2 = arith.constant 0 : index
    %7 = vector.load %arg6[%c0_1, %c0_2] : memref<16x128xf32, #tpu.memory_space<vmem>>, vector<16x128xf32>
    %c0_3 = arith.constant 0 : index
    %c0_4 = arith.constant 0 : index
    %8 = vector.load %arg2[%c0_3, %c0_4] : memref<16x128xbf16, #tpu.memory_space<vmem>>, vector<16x128xbf16>
    %cst = arith.constant dense<0.000000e+00> : vector<16x128xf32>
    %9 = tpu.matmul %8, %6, %cst {dimension_numbers = #tpu.dot_dimension_numbers<[1], [0], [0], [1], [0, 0, 1, 1], [], []>} : vector<16x128xbf16>, vector<128x128xbf16>, vector<16x128xf32> -> vector<16x128xf32>
    %10 = arith.addf %7, %9 : vector<16x128xf32>
    %c0_5 = arith.constant 0 : index
    %c0_6 = arith.constant 0 : index
    %11 = vector.load %arg6[%c0_5, %c0_6] : memref<16x128xf32, #tpu.memory_space<vmem>>, vector<16x128xf32>
    tpu.vector_store %arg6[%c0_5, %c0_6], %10 {strides = array<i32>} : memref<16x128xf32, #tpu.memory_space<vmem>>, vector<16x128xf32>,
    %c0_i32_7 = arith.constant 0 : i32
    %12 = arith.cmpi eq, %arg1, %c0_i32_7 : i32
    %13 = arith.extui %12 : i1 to i32
    %c0_i32_8 = arith.constant 0 : i32
    %14 = arith.cmpi ne, %13, %c0_i32_8 : i32
    scf.if %14 {
      %c0_9 = arith.constant 0 : index
      %c0_10 = arith.constant 0 : index
      %15 = vector.load %arg6[%c0_9, %c0_10] : memref<16x128xf32, #tpu.memory_space<vmem>>, vector<16x128xf32>
      %c0_11 = arith.constant 0 : index
      %c0_12 = arith.constant 0 : index
      %16 = vector.load %arg4[%c0_11, %c0_12] : memref<1x128xf32, #tpu.memory_space<vmem>>, vector<1x128xf32>
      %17 = vector.broadcast %16 : vector<1x128xf32> to vector<16x128xf32>
      %18 = arith.addf %15, %17 : vector<16x128xf32>
      %19 = arith.truncf %18 : vector<16x128xf32> to vector<16x128xbf16>
      %c0_13 = arith.constant 0 : index
      %c0_14 = arith.constant 0 : index
      %20 = vector.load %arg5[%c0_13, %c0_14] : memref<16x128xbf16, #tpu.memory_space<vmem>>, vector<16x128xbf16>
      tpu.vector_store %arg5[%c0_13, %c0_14], %19 {strides = array<i32>} : memref<16x128xbf16, #tpu.memory_space<vmem>>, vector<16x128xbf16>,
    } else {
    }
    return
  }
  func.func @transform_0(%arg0: i32, %arg1: i32) -> (i32, i32) {
    %c0_i32 = arith.constant 0 : i32
    return %arg0, %arg1 : i32, i32
  }
  func.func @transform_1(%arg0: i32, %arg1: i32) -> (i32, i32) {
    %c0_i32 = arith.constant 0 : i32
    %c0_i32_0 = arith.constant 0 : i32
    %c0_i32_1 = arith.constant 0 : i32
    return %c0_i32, %c0_i32_0 : i32, i32
  }
  func.func @transform_2(%arg0: i32, %arg1: i32) -> (i32, i32) {
    %c0_i32 = arith.constant 0 : i32
    %c0_i32_0 = arith.constant 0 : i32
    %c0_i32_1 = arith.constant 0 : i32
    return %c0_i32, %c0_i32_0 : i32, i32
  }
  func.func @transform_3(%arg0: i32, %arg1: i32) -> (i32, i32) {
    %c0_i32 = arith.constant 0 : i32
    %c0_i32_0 = arith.constant 0 : i32
    return %arg0, %c0_i32 : i32, i32
  }
}

module attributes {stable_mosaic.version = 11 : i64} {
  func.func @_fused_matmul_kernel(%arg0: i32, %arg1: i32, %arg2: memref<16x16xbf16, #tpu.memory_space<vmem>>, %arg3: memref<16x128xbf16, #tpu.memory_space<vmem>>, %arg4: memref<1x128xf32, #tpu.memory_space<vmem>>, %arg5: memref<16x128xf32, #tpu.memory_space<vmem>>, %arg6: memref<16x128xf32, #tpu.memory_space<vmem>>) attributes {dimension_semantics = [#tpu.dimension_semantics<parallel>, #tpu.dimension_semantics<arbitrary>], iteration_bounds = array<i64: 1, 1>, scalar_prefetch = 0 : i64, scratch_operands = 1 : i64, tpu.core_type = #tpu.core_type<tc>, window_params = [{transform_indices = @transform_0, window_bounds = array<i64: 16, 16>}, {pipeline_mode = #tpu.pipeline_mode<synchronous>, transform_indices = @transform_1, window_bounds = array<i64: 16, 128>}, {pipeline_mode = #tpu.pipeline_mode<synchronous>, transform_indices = @transform_2, window_bounds = array<i64: 1, 128>}, {transform_indices = @transform_3, window_bounds = array<i64: 16, 128>}]} {
    %c0_i32 = arith.constant 0 : i32
    %0 = arith.cmpi eq, %arg1, %c0_i32 : i32
    %1 = arith.extui %0 : i1 to i32
    %c0_i32_0 = arith.constant 0 : i32
    %2 = arith.cmpi ne, %1, %c0_i32_0 : i32
    scf.if %2 {
      %cst_9 = arith.constant 0.000000e+00 : f32
      %15 = vector.broadcast %cst_9 : f32 to vector<16x128xf32>
      %c0_10 = arith.constant 0 : index
      %c0_11 = arith.constant 0 : index
      %16 = vector.load %arg6[%c0_10, %c0_11] : memref<16x128xf32, #tpu.memory_space<vmem>>, vector<16x128xf32>
      tpu.vector_store %arg6[%c0_10, %c0_11], %15 {strides = array<i32>} : memref<16x128xf32, #tpu.memory_space<vmem>>, vector<16x128xf32>,
    } else {
    }
    %c16_i32 = arith.constant 16 : i32
    %3 = arith.muli %arg1, %c16_i32 : i32
    %4 = tpu.assume_multiple %3, 16 : i32
    %5 = arith.index_cast %4 : i32 to index
    %c0 = arith.constant 0 : index
    %6 = vector.load %arg3[%5, %c0] : memref<16x128xbf16, #tpu.memory_space<vmem>>, vector<16x128xbf16>
    %c0_1 = arith.constant 0 : index
    %c0_2 = arith.constant 0 : index
    %7 = vector.load %arg6[%c0_1, %c0_2] : memref<16x128xf32, #tpu.memory_space<vmem>>, vector<16x128xf32>
    %c0_3 = arith.constant 0 : index
    %c0_4 = arith.constant 0 : index
    %8 = vector.load %arg2[%c0_3, %c0_4] : memref<16x16xbf16, #tpu.memory_space<vmem>>, vector<16x16xbf16>
    %cst = arith.constant dense<0.000000e+00> : vector<16x128xf32>
    %9 = tpu.matmul %8, %6, %cst {dimension_numbers = #tpu.dot_dimension_numbers<[1], [0], [0], [1], [0, 0, 1, 1], [], []>} : vector<16x16xbf16>, vector<16x128xbf16>, vector<16x128xf32> -> vector<16x128xf32>
    %10 = arith.addf %7, %9 : vector<16x128xf32>
    %c0_5 = arith.constant 0 : index
    %c0_6 = arith.constant 0 : index
    %11 = vector.load %arg6[%c0_5, %c0_6] : memref<16x128xf32, #tpu.memory_space<vmem>>, vector<16x128xf32>
    tpu.vector_store %arg6[%c0_5, %c0_6], %10 {strides = array<i32>} : memref<16x128xf32, #tpu.memory_space<vmem>>, vector<16x128xf32>,
    %c0_i32_7 = arith.constant 0 : i32
    %12 = arith.cmpi eq, %arg1, %c0_i32_7 : i32
    %13 = arith.extui %12 : i1 to i32
    %c0_i32_8 = arith.constant 0 : i32
    %14 = arith.cmpi ne, %13, %c0_i32_8 : i32
    scf.if %14 {
      %c0_9 = arith.constant 0 : index
      %c0_10 = arith.constant 0 : index
      %15 = vector.load %arg6[%c0_9, %c0_10] : memref<16x128xf32, #tpu.memory_space<vmem>>, vector<16x128xf32>
      %c0_11 = arith.constant 0 : index
      %c0_12 = arith.constant 0 : index
      %16 = vector.load %arg4[%c0_11, %c0_12] : memref<1x128xf32, #tpu.memory_space<vmem>>, vector<1x128xf32>
      %17 = vector.broadcast %16 : vector<1x128xf32> to vector<16x128xf32>
      %18 = arith.addf %15, %17 : vector<16x128xf32>
      %cst_13 = arith.constant 0.000000e+00 : f32
      %19 = vector.broadcast %cst_13 : f32 to vector<16x128xf32>
      %20 = arith.maximumf %18, %19 : vector<16x128xf32>
      %c0_14 = arith.constant 0 : index
      %c0_15 = arith.constant 0 : index
      %21 = vector.load %arg5[%c0_14, %c0_15] : memref<16x128xf32, #tpu.memory_space<vmem>>, vector<16x128xf32>
      tpu.vector_store %arg5[%c0_14, %c0_15], %20 {strides = array<i32>} : memref<16x128xf32, #tpu.memory_space<vmem>>, vector<16x128xf32>,
    } else {
    }
    return
  }
  func.func @transform_0(%arg0: i32, %arg1: i32) -> (i32, i32) {
    %c0_i32 = arith.constant 0 : i32
    return %arg0, %arg1 : i32, i32
  }
  func.func @transform_1(%arg0: i32, %arg1: i32) -> (i32, i32) {
    %c0_i32 = arith.constant 0 : i32
    %c0_i32_0 = arith.constant 0 : i32
    %c0_i32_1 = arith.constant 0 : i32
    return %c0_i32, %c0_i32_0 : i32, i32
  }
  func.func @transform_2(%arg0: i32, %arg1: i32) -> (i32, i32) {
    %c0_i32 = arith.constant 0 : i32
    %c0_i32_0 = arith.constant 0 : i32
    %c0_i32_1 = arith.constant 0 : i32
    return %c0_i32, %c0_i32_0 : i32, i32
  }
  func.func @transform_3(%arg0: i32, %arg1: i32) -> (i32, i32) {
    %c0_i32 = arith.constant 0 : i32
    %c0_i32_0 = arith.constant 0 : i32
    return %arg0, %c0_i32 : i32, i32
  }
}

</mosaic_0001>

<llo_original>
// kernel: forward.4
$region0: #{forward.4}
  #allocation0 [shape = 'u32[]', space=smem, size = 0x4, offset = 0x4, fixed_abs, tag = 'smem constant byte address 0x4 - core index']
  #allocation1 [shape = 'u32[72,128]{1,0:T(1,128)}', space=vmem, size = 0x9000, scoped, tag = 'internal scratch']
  #allocation2 [shape = 'f32[16,128]{1,0:T(8,128)}', space=vmem, size = 0x2000, scoped, tag = 'scratch operand']
  %s0 = inlined_call_operand.vmem [shape: bf16[16,16], index: 0, kind: input, shape index: {}]
  %s1 = inlined_call_operand.vmem [shape: bf16[16,128], index: 1, kind: input, shape index: {}]
  %s2 = inlined_call_operand.vmem [shape: f32[1,128], index: 2, kind: input, shape index: {}]
  %s3 = inlined_call_operand.vmem [shape: bf16[16,128], index: 3, kind: output, shape index: {}]
  %s4 = sld [smem:[#allocation0]]
  $region30: #{forward.4} parent=0
    _
  %s6 = ssub.s32 1, %s4
  %s7 = scalar_select 0, %s6, %s4
  // Predicated region
  $region2: #{forward.4} parent=0 // pred_check
    _
  $region3: #{forward.4} parent=0 // pred_check_branch
    %9 = sbr.rel (0) target = $region5
  $region4: #{forward.4} parent=0 // pred_region
    _
  $region5: #{forward.4} parent=0 // pred_fallthru
    _
  // Predicated region
  $region6: #{forward.4} parent=0 // pred_check
    _
  $region7: #{forward.4} parent=0 // pred_check_branch
    %11 = sbr.rel (0) target = $region9
  $region8: #{forward.4} parent=0 // pred_region
    _
  $region9: #{forward.4} parent=0 // pred_fallthru
    _
  // Predicated region
  $region10: #{forward.4} parent=0 // pred_check
    _
  $region11: #{forward.4} parent=0 // pred_check_branch
    %13 = sbr.rel (0) target = $region13
  $region12: #{forward.4} parent=0 // pred_region
    _
  $region13: #{forward.4} parent=0 // pred_fallthru
    _
  %p15 = scmp.eq.s32.totalorder 0, 0
  // Predicated region
  $region14: #{forward.4} parent=0 // pred_check
    %p16 = pneg %p15
  $region15: #{forward.4} parent=0 // pred_check_branch
    %18 = sbr.rel (%p16) target = $region17
  $region16: #{forward.4} parent=0 // pred_region
    %19 = vst [vmem:[#allocation2] sm:$0xff] 0.0
    %20 = vst [vmem:[#allocation2 + $0x8] sm:$0xff] 0.0
  $region17: #{forward.4} parent=0 // pred_fallthru
    _
  %s21 = smul.u32 0, 16
  %s22 = sshra.s32 %s21, 3
  %s23 = sand.u32 %s21, 7
  %s24 = smul.addr %s22, 4
  %s25 = scalar_lea.vmem %s1, %s24
  %v26 = vld [vmem:[%s25] sm:$0xf]
  %v27 = vld [vmem:[%s25 + $0x4] sm:$0xf]
  %v28 = vld [vmem:[#allocation2] sm:$0xff]
  %v29 = vld [vmem:[#allocation2 + $0x8] sm:$0xff]
  %v30 = vld [vmem:[%s0] sm:$0xf]
  %v31 = vld [vmem:[%s0 + $0x4] sm:$0xf]
  %v34 = vunpack.c.l.b16 %v30
  %v35 = vunpack.c.l.b16 %v31
  %v36 = vpack.c.b16 %v35, %v34
  %v39 = vunpack.c.l.b16 %v26
  %v40 = vunpack.c.l.b16 %v27
  %v41 = vpack.c.b16 %v40, %v39
  %vm43 = vcmask 130048
  %v45 = vsel %vm43, %v36, 0
  %47 = vmatpush.bf16.msra.mxu0 0
  %48 = vmatpush.bf16.msra.mxu0 0
  %49 = vmatpush.bf16.msra.mxu0 0
  %50 = vmatpush.bf16.msra.mxu0 0
  %51 = vmatpush.bf16.msra.mxu0 0
  %52 = vmatpush.bf16.msra.mxu0 0
  %53 = vmatpush.bf16.msra.mxu0 0
  %54 = vmatpush.bf16.msra.mxu0 %v41
  %55 = vmatmul.bf16.gmra.mxu0 %v45
  %v56 = vpop.f32.mrf.mxu0
  %v57 = vadd.f32 0.0, %v56
  %v58 = vpop.f32.mrf.mxu0
  %v59 = vadd.f32 0.0, %v58
  %60 = vdwg.mxu0
  %v61 = vadd.f32 %v28, %v57
  %v62 = vadd.f32 %v29, %v59
  %63 = vst [vmem:[#allocation2] sm:$0xff] %v61
  %64 = vst [vmem:[#allocation2 + $0x8] sm:$0xff] %v62
  // Predicated region
  $region18: #{forward.4} parent=0 // pred_check
    %p65 = pneg %p15
  $region19: #{forward.4} parent=0 // pred_check_branch
    %67 = sbr.rel (%p65) target = $region21
  $region20: #{forward.4} parent=0 // pred_region
    %v68 = vld [vmem:[#allocation2] sm:$0xff]
    %v69 = vld [vmem:[#allocation2 + $0x8] sm:$0xff]
    %v70 = vld [vmem:[%s2] sm:$0x1]
    %v72 = vperm.slane %v70, 0
    %v74 = vadd.f32 %v68, %v72
    %v75 = vadd.f32 %v69, %v72
    %v76 = vpack.c.bf16 %v74, %v74
    %v77 = vpack.c.bf16 %v75, %v75
    %78 = vst [vmem:[%s3] sm:$0xf] %v76
    %79 = vst [vmem:[%s3 + $0x4] sm:$0xf] %v77
  $region21: #{forward.4} parent=0 // pred_fallthru
    _
  // Predicated region
  $region22: #{forward.4} parent=0 // pred_check
    _
  $region23: #{forward.4} parent=0 // pred_check_branch
    %81 = sbr.rel (0) target = $region25
  $region24: #{forward.4} parent=0 // pred_region
    _
  $region25: #{forward.4} parent=0 // pred_fallthru
    _
  // Predicated region
  $region26: #{forward.4} parent=0 // pred_check
    _
  $region27: #{forward.4} parent=0 // pred_check_branch
    %83 = sbr.rel (0) target = $region29
  $region28: #{forward.4} parent=0 // pred_region
    _
  $region29: #{forward.4} parent=0 // pred_fallthru
    _

// kernel: forward.5
$region0: #{forward.5}
  #allocation0 [shape = 'u32[]', space=smem, size = 0x4, offset = 0x4, fixed_abs, tag = 'smem constant byte address 0x4 - core index']
  #allocation1 [shape = 'u32[72,128]{1,0:T(1,128)}', space=vmem, size = 0x9000, scoped, tag = 'internal scratch']
  #allocation2 [shape = 'f32[16,128]{1,0:T(8,128)}', space=vmem, size = 0x2000, scoped, tag = 'scratch operand']
  %s0 = inlined_call_operand.vmem [shape: bf16[16,128], index: 0, kind: input, shape index: {}]
  %s1 = inlined_call_operand.vmem [shape: bf16[128,128], index: 1, kind: input, shape index: {}]
  %s2 = inlined_call_operand.vmem [shape: f32[1,128], index: 2, kind: input, shape index: {}]
  %s3 = inlined_call_operand.vmem [shape: bf16[16,128], index: 3, kind: output, shape index: {}]
  %s4 = sld [smem:[#allocation0]]
  $region30: #{forward.5} parent=0
    _
  %s6 = ssub.s32 1, %s4
  %s7 = scalar_select 0, %s6, %s4
  // Predicated region
  $region2: #{forward.5} parent=0 // pred_check
    _
  $region3: #{forward.5} parent=0 // pred_check_branch
    %9 = sbr.rel (0) target = $region5
  $region4: #{forward.5} parent=0 // pred_region
    _
  $region5: #{forward.5} parent=0 // pred_fallthru
    _
  // Predicated region
  $region6: #{forward.5} parent=0 // pred_check
    _
  $region7: #{forward.5} parent=0 // pred_check_branch
    %11 = sbr.rel (0) target = $region9
  $region8: #{forward.5} parent=0 // pred_region
    _
  $region9: #{forward.5} parent=0 // pred_fallthru
    _
  // Predicated region
  $region10: #{forward.5} parent=0 // pred_check
    _
  $region11: #{forward.5} parent=0 // pred_check_branch
    %13 = sbr.rel (0) target = $region13
  $region12: #{forward.5} parent=0 // pred_region
    _
  $region13: #{forward.5} parent=0 // pred_fallthru
    _
  %p14 = scmp.eq.s32.totalorder 0, 0
  // Predicated region
  $region14: #{forward.5} parent=0 // pred_check
    %p15 = pneg %p14
  $region15: #{forward.5} parent=0 // pred_check_branch
    %17 = sbr.rel (%p15) target = $region17
  $region16: #{forward.5} parent=0 // pred_region
    %18 = vst [vmem:[#allocation2] sm:$0xff] 0.0
    %19 = vst [vmem:[#allocation2 + $0x8] sm:$0xff] 0.0
  $region17: #{forward.5} parent=0 // pred_fallthru
    _
  %s20 = smul.u32 0, 128
  %s21 = sshra.s32 %s20, 3
  %s22 = sand.u32 %s20, 7
  %s23 = smul.addr %s21, 4
  %s24 = scalar_lea.vmem %s1, %s23
  %v25 = vld [vmem:[%s24] sm:$0xf]
  %v26 = vld [vmem:[%s24 + $0x4] sm:$0xf]
  %v27 = vld [vmem:[%s24 + $0x8] sm:$0xf]
  %v28 = vld [vmem:[%s24 + $0xc] sm:$0xf]
  %v29 = vld [vmem:[%s24 + $0x10] sm:$0xf]
  %v30 = vld [vmem:[%s24 + $0x14] sm:$0xf]
  %v31 = vld [vmem:[%s24 + $0x18] sm:$0xf]
  %v32 = vld [vmem:[%s24 + $0x1c] sm:$0xf]
  %v33 = vld [vmem:[%s24 + $0x20] sm:$0xf]
  %v34 = vld [vmem:[%s24 + $0x24] sm:$0xf]
  %v35 = vld [vmem:[%s24 + $0x28] sm:$0xf]
  %v36 = vld [vmem:[%s24 + $0x2c] sm:$0xf]
  %v37 = vld [vmem:[%s24 + $0x30] sm:$0xf]
  %v38 = vld [vmem:[%s24 + $0x34] sm:$0xf]
  %v39 = vld [vmem:[%s24 + $0x38] sm:$0xf]
  %v40 = vld [vmem:[%s24 + $0x3c] sm:$0xf]
  %v41 = vld [vmem:[#allocation2] sm:$0xff]
  %v42 = vld [vmem:[#allocation2 + $0x8] sm:$0xff]
  %v43 = vld [vmem:[%s0] sm:$0xf]
  %v44 = vld [vmem:[%s0 + $0x4] sm:$0xf]
  %v47 = vunpack.c.l.b16 %v43
  %v48 = vunpack.c.l.b16 %v44
  %v49 = vpack.c.b16 %v48, %v47
  %v67 = vunpack.c.l.b16 %v25
  %v68 = vunpack.c.l.b16 %v26
  %v69 = vunpack.c.l.b16 %v27
  %v70 = vunpack.c.l.b16 %v28
  %v71 = vunpack.c.l.b16 %v29
  %v72 = vunpack.c.l.b16 %v30
  %v73 = vunpack.c.l.b16 %v31
  %v74 = vunpack.c.l.b16 %v32
  %v75 = vunpack.c.l.b16 %v33
  %v76 = vunpack.c.l.b16 %v34
  %v77 = vunpack.c.l.b16 %v35
  %v78 = vunpack.c.l.b16 %v36
  %v79 = vunpack.c.l.b16 %v37
  %v80 = vunpack.c.l.b16 %v38
  %v81 = vunpack.c.l.b16 %v39
  %v82 = vunpack.c.l.b16 %v40
  %v83 = vpack.c.b16 %v68, %v67
  %v84 = vpack.c.b16 %v70, %v69
  %v85 = vpack.c.b16 %v72, %v71
  %v86 = vpack.c.b16 %v74, %v73
  %v87 = vpack.c.b16 %v76, %v75
  %v88 = vpack.c.b16 %v78, %v77
  %v89 = vpack.c.b16 %v80, %v79
  %v90 = vpack.c.b16 %v82, %v81
  %99 = vmatpush.bf16.msra.mxu0 %v90
  %100 = vmatpush.bf16.msra.mxu0 %v89
  %101 = vmatpush.bf16.msra.mxu0 %v88
  %102 = vmatpush.bf16.msra.mxu0 %v87
  %103 = vmatpush.bf16.msra.mxu0 %v86
  %104 = vmatpush.bf16.msra.mxu0 %v85
  %105 = vmatpush.bf16.msra.mxu0 %v84
  %106 = vmatpush.bf16.msra.mxu0 %v83
  %107 = vmatmul.bf16.gmra.mxu0 %v49
  %v108 = vpop.f32.mrf.mxu0
  %v109 = vadd.f32 0.0, %v108
  %v110 = vpop.f32.mrf.mxu0
  %v111 = vadd.f32 0.0, %v110
  %112 = vdwg.mxu0
  %v113 = vadd.f32 %v41, %v109
  %v114 = vadd.f32 %v42, %v111
  %115 = vst [vmem:[#allocation2] sm:$0xff] %v113
  %116 = vst [vmem:[#allocation2 + $0x8] sm:$0xff] %v114
  // Predicated region
  $region18: #{forward.5} parent=0 // pred_check
    %p117 = pneg %p14
  $region19: #{forward.5} parent=0 // pred_check_branch
    %119 = sbr.rel (%p117) target = $region21
  $region20: #{forward.5} parent=0 // pred_region
    %v120 = vld [vmem:[#allocation2] sm:$0xff]
    %v121 = vld [vmem:[#allocation2 + $0x8] sm:$0xff]
    %v122 = vld [vmem:[%s2] sm:$0x1]
    %v124 = vperm.slane %v122, 0
    %v126 = vadd.f32 %v120, %v124
    %v127 = vadd.f32 %v121, %v124
    %v128 = vmax.f32 %v126, 0.0
    %v129 = vmax.f32 %v127, 0.0
    %v130 = vpack.c.bf16 %v128, %v128
    %v131 = vpack.c.bf16 %v129, %v129
    %132 = vst [vmem:[%s3] sm:$0xf] %v130
    %133 = vst [vmem:[%s3 + $0x4] sm:$0xf] %v131
  $region21: #{forward.5} parent=0 // pred_fallthru
    _
  // Predicated region
  $region22: #{forward.5} parent=0 // pred_check
    _
  $region23: #{forward.5} parent=0 // pred_check_branch
    %135 = sbr.rel (0) target = $region25
  $region24: #{forward.5} parent=0 // pred_region
    _
  $region25: #{forward.5} parent=0 // pred_fallthru
    _
  // Predicated region
  $region26: #{forward.5} parent=0 // pred_check
    _
  $region27: #{forward.5} parent=0 // pred_check_branch
    %137 = sbr.rel (0) target = $region29
  $region28: #{forward.5} parent=0 // pred_region
    _
  $region29: #{forward.5} parent=0 // pred_fallthru
    _

// kernel: forward.6
$region0: #{forward.6}
  #allocation0 [shape = 'u32[]', space=smem, size = 0x4, offset = 0x4, fixed_abs, tag = 'smem constant byte address 0x4 - core index']
  #allocation1 [shape = 'u32[72,128]{1,0:T(1,128)}', space=vmem, size = 0x9000, scoped, tag = 'internal scratch']
  #allocation2 [shape = 'f32[16,128]{1,0:T(8,128)}', space=vmem, size = 0x2000, scoped, tag = 'scratch operand']
  %s0 = inlined_call_operand.vmem [shape: bf16[16,128], index: 0, kind: input, shape index: {}]
  %s1 = inlined_call_operand.vmem [shape: bf16[128,128], index: 1, kind: input, shape index: {}]
  %s2 = inlined_call_operand.vmem [shape: f32[1,128], index: 2, kind: input, shape index: {}]
  %s3 = inlined_call_operand.vmem [shape: bf16[16,128], index: 3, kind: output, shape index: {}]
  %s4 = sld [smem:[#allocation0]]
  $region30: #{forward.6} parent=0
    _
  %s6 = ssub.s32 1, %s4
  %s7 = scalar_select 0, %s6, %s4
  // Predicated region
  $region2: #{forward.6} parent=0 // pred_check
    _
  $region3: #{forward.6} parent=0 // pred_check_branch
    %9 = sbr.rel (0) target = $region5
  $region4: #{forward.6} parent=0 // pred_region
    _
  $region5: #{forward.6} parent=0 // pred_fallthru
    _
  // Predicated region
  $region6: #{forward.6} parent=0 // pred_check
    _
  $region7: #{forward.6} parent=0 // pred_check_branch
    %11 = sbr.rel (0) target = $region9
  $region8: #{forward.6} parent=0 // pred_region
    _
  $region9: #{forward.6} parent=0 // pred_fallthru
    _
  // Predicated region
  $region10: #{forward.6} parent=0 // pred_check
    _
  $region11: #{forward.6} parent=0 // pred_check_branch
    %13 = sbr.rel (0) target = $region13
  $region12: #{forward.6} parent=0 // pred_region
    _
  $region13: #{forward.6} parent=0 // pred_fallthru
    _
  %p14 = scmp.eq.s32.totalorder 0, 0
  // Predicated region
  $region14: #{forward.6} parent=0 // pred_check
    %p15 = pneg %p14
  $region15: #{forward.6} parent=0 // pred_check_branch
    %17 = sbr.rel (%p15) target = $region17
  $region16: #{forward.6} parent=0 // pred_region
    %18 = vst [vmem:[#allocation2] sm:$0xff] 0.0
    %19 = vst [vmem:[#allocation2 + $0x8] sm:$0xff] 0.0
  $region17: #{forward.6} parent=0 // pred_fallthru
    _
  %s20 = smul.u32 0, 128
  %s21 = sshra.s32 %s20, 3
  %s22 = sand.u32 %s20, 7
  %s23 = smul.addr %s21, 4
  %s24 = scalar_lea.vmem %s1, %s23
  %v25 = vld [vmem:[%s24] sm:$0xf]
  %v26 = vld [vmem:[%s24 + $0x4] sm:$0xf]
  %v27 = vld [vmem:[%s24 + $0x8] sm:$0xf]
  %v28 = vld [vmem:[%s24 + $0xc] sm:$0xf]
  %v29 = vld [vmem:[%s24 + $0x10] sm:$0xf]
  %v30 = vld [vmem:[%s24 + $0x14] sm:$0xf]
  %v31 = vld [vmem:[%s24 + $0x18] sm:$0xf]
  %v32 = vld [vmem:[%s24 + $0x1c] sm:$0xf]
  %v33 = vld [vmem:[%s24 + $0x20] sm:$0xf]
  %v34 = vld [vmem:[%s24 + $0x24] sm:$0xf]
  %v35 = vld [vmem:[%s24 + $0x28] sm:$0xf]
  %v36 = vld [vmem:[%s24 + $0x2c] sm:$0xf]
  %v37 = vld [vmem:[%s24 + $0x30] sm:$0xf]
  %v38 = vld [vmem:[%s24 + $0x34] sm:$0xf]
  %v39 = vld [vmem:[%s24 + $0x38] sm:$0xf]
  %v40 = vld [vmem:[%s24 + $0x3c] sm:$0xf]
  %v41 = vld [vmem:[#allocation2] sm:$0xff]
  %v42 = vld [vmem:[#allocation2 + $0x8] sm:$0xff]
  %v43 = vld [vmem:[%s0] sm:$0xf]
  %v44 = vld [vmem:[%s0 + $0x4] sm:$0xf]
  %v47 = vunpack.c.l.b16 %v43
  %v48 = vunpack.c.l.b16 %v44
  %v49 = vpack.c.b16 %v48, %v47
  %v67 = vunpack.c.l.b16 %v25
  %v68 = vunpack.c.l.b16 %v26
  %v69 = vunpack.c.l.b16 %v27
  %v70 = vunpack.c.l.b16 %v28
  %v71 = vunpack.c.l.b16 %v29
  %v72 = vunpack.c.l.b16 %v30
  %v73 = vunpack.c.l.b16 %v31
  %v74 = vunpack.c.l.b16 %v32
  %v75 = vunpack.c.l.b16 %v33
  %v76 = vunpack.c.l.b16 %v34
  %v77 = vunpack.c.l.b16 %v35
  %v78 = vunpack.c.l.b16 %v36
  %v79 = vunpack.c.l.b16 %v37
  %v80 = vunpack.c.l.b16 %v38
  %v81 = vunpack.c.l.b16 %v39
  %v82 = vunpack.c.l.b16 %v40
  %v83 = vpack.c.b16 %v68, %v67
  %v84 = vpack.c.b16 %v70, %v69
  %v85 = vpack.c.b16 %v72, %v71
  %v86 = vpack.c.b16 %v74, %v73
  %v87 = vpack.c.b16 %v76, %v75
  %v88 = vpack.c.b16 %v78, %v77
  %v89 = vpack.c.b16 %v80, %v79
  %v90 = vpack.c.b16 %v82, %v81
  %99 = vmatpush.bf16.msra.mxu0 %v90
  %100 = vmatpush.bf16.msra.mxu0 %v89
  %101 = vmatpush.bf16.msra.mxu0 %v88
  %102 = vmatpush.bf16.msra.mxu0 %v87
  %103 = vmatpush.bf16.msra.mxu0 %v86
  %104 = vmatpush.bf16.msra.mxu0 %v85
  %105 = vmatpush.bf16.msra.mxu0 %v84
  %106 = vmatpush.bf16.msra.mxu0 %v83
  %107 = vmatmul.bf16.gmra.mxu0 %v49
  %v108 = vpop.f32.mrf.mxu0
  %v109 = vadd.f32 0.0, %v108
  %v110 = vpop.f32.mrf.mxu0
  %v111 = vadd.f32 0.0, %v110
  %112 = vdwg.mxu0
  %v113 = vadd.f32 %v41, %v109
  %v114 = vadd.f32 %v42, %v111
  %115 = vst [vmem:[#allocation2] sm:$0xff] %v113
  %116 = vst [vmem:[#allocation2 + $0x8] sm:$0xff] %v114
  // Predicated region
  $region18: #{forward.6} parent=0 // pred_check
    %p117 = pneg %p14
  $region19: #{forward.6} parent=0 // pred_check_branch
    %119 = sbr.rel (%p117) target = $region21
  $region20: #{forward.6} parent=0 // pred_region
    %v120 = vld [vmem:[#allocation2] sm:$0xff]
    %v121 = vld [vmem:[#allocation2 + $0x8] sm:$0xff]
    %v122 = vld [vmem:[%s2] sm:$0x1]
    %v124 = vperm.slane %v122, 0
    %v126 = vadd.f32 %v120, %v124
    %v127 = vadd.f32 %v121, %v124
    %v128 = vpack.c.bf16 %v126, %v126
    %v129 = vpack.c.bf16 %v127, %v127
    %130 = vst [vmem:[%s3] sm:$0xf] %v128
    %131 = vst [vmem:[%s3 + $0x4] sm:$0xf] %v129
  $region21: #{forward.6} parent=0 // pred_fallthru
    _
  // Predicated region
  $region22: #{forward.6} parent=0 // pred_check
    _
  $region23: #{forward.6} parent=0 // pred_check_branch
    %133 = sbr.rel (0) target = $region25
  $region24: #{forward.6} parent=0 // pred_region
    _
  $region25: #{forward.6} parent=0 // pred_fallthru
    _
  // Predicated region
  $region26: #{forward.6} parent=0 // pred_check
    _
  $region27: #{forward.6} parent=0 // pred_check_branch
    %135 = sbr.rel (0) target = $region29
  $region28: #{forward.6} parent=0 // pred_region
    _
  $region29: #{forward.6} parent=0 // pred_fallthru
    _

// kernel: forward.7
$region0: #{forward.7}
  #allocation0 [shape = 'u32[]', space=smem, size = 0x4, offset = 0x4, fixed_abs, tag = 'smem constant byte address 0x4 - core index']
  #allocation1 [shape = 'u32[72,128]{1,0:T(1,128)}', space=vmem, size = 0x9000, scoped, tag = 'internal scratch']
  #allocation2 [shape = 'f32[16,128]{1,0:T(8,128)}', space=vmem, size = 0x2000, scoped, tag = 'scratch operand']
  %s0 = inlined_call_operand.vmem [shape: bf16[16,16], index: 0, kind: input, shape index: {}]
  %s1 = inlined_call_operand.vmem [shape: bf16[16,128], index: 1, kind: input, shape index: {}]
  %s2 = inlined_call_operand.vmem [shape: f32[1,128], index: 2, kind: input, shape index: {}]
  %s3 = inlined_call_operand.vmem [shape: f32[16,128], index: 3, kind: output, shape index: {}]
  %s4 = sld [smem:[#allocation0]]
  $region30: #{forward.7} parent=0
    _
  %s6 = ssub.s32 1, %s4
  %s7 = scalar_select 0, %s6, %s4
  // Predicated region
  $region2: #{forward.7} parent=0 // pred_check
    _
  $region3: #{forward.7} parent=0 // pred_check_branch
    %9 = sbr.rel (0) target = $region5
  $region4: #{forward.7} parent=0 // pred_region
    _
  $region5: #{forward.7} parent=0 // pred_fallthru
    _
  // Predicated region
  $region6: #{forward.7} parent=0 // pred_check
    _
  $region7: #{forward.7} parent=0 // pred_check_branch
    %11 = sbr.rel (0) target = $region9
  $region8: #{forward.7} parent=0 // pred_region
    _
  $region9: #{forward.7} parent=0 // pred_fallthru
    _
  // Predicated region
  $region10: #{forward.7} parent=0 // pred_check
    _
  $region11: #{forward.7} parent=0 // pred_check_branch
    %13 = sbr.rel (0) target = $region13
  $region12: #{forward.7} parent=0 // pred_region
    _
  $region13: #{forward.7} parent=0 // pred_fallthru
    _
  %p15 = scmp.eq.s32.totalorder 0, 0
  // Predicated region
  $region14: #{forward.7} parent=0 // pred_check
    %p16 = pneg %p15
  $region15: #{forward.7} parent=0 // pred_check_branch
    %18 = sbr.rel (%p16) target = $region17
  $region16: #{forward.7} parent=0 // pred_region
    %19 = vst [vmem:[#allocation2] sm:$0xff] 0.0
    %20 = vst [vmem:[#allocation2 + $0x8] sm:$0xff] 0.0
  $region17: #{forward.7} parent=0 // pred_fallthru
    _
  %s21 = smul.u32 0, 16
  %s22 = sshra.s32 %s21, 3
  %s23 = sand.u32 %s21, 7
  %s24 = smul.addr %s22, 4
  %s25 = scalar_lea.vmem %s1, %s24
  %v26 = vld [vmem:[%s25] sm:$0xf]
  %v27 = vld [vmem:[%s25 + $0x4] sm:$0xf]
  %v28 = vld [vmem:[#allocation2] sm:$0xff]
  %v29 = vld [vmem:[#allocation2 + $0x8] sm:$0xff]
  %v30 = vld [vmem:[%s0] sm:$0xf]
  %v31 = vld [vmem:[%s0 + $0x4] sm:$0xf]
  %v34 = vunpack.c.l.b16 %v30
  %v35 = vunpack.c.l.b16 %v31
  %v36 = vpack.c.b16 %v35, %v34
  %v39 = vunpack.c.l.b16 %v26
  %v40 = vunpack.c.l.b16 %v27
  %v41 = vpack.c.b16 %v40, %v39
  %vm43 = vcmask 130048
  %v45 = vsel %vm43, %v36, 0
  %47 = vmatpush.bf16.msra.mxu0 0
  %48 = vmatpush.bf16.msra.mxu0 0
  %49 = vmatpush.bf16.msra.mxu0 0
  %50 = vmatpush.bf16.msra.mxu0 0
  %51 = vmatpush.bf16.msra.mxu0 0
  %52 = vmatpush.bf16.msra.mxu0 0
  %53 = vmatpush.bf16.msra.mxu0 0
  %54 = vmatpush.bf16.msra.mxu0 %v41
  %55 = vmatmul.bf16.gmra.mxu0 %v45
  %v56 = vpop.f32.mrf.mxu0
  %v57 = vadd.f32 0.0, %v56
  %v58 = vpop.f32.mrf.mxu0
  %v59 = vadd.f32 0.0, %v58
  %60 = vdwg.mxu0
  %v61 = vadd.f32 %v28, %v57
  %v62 = vadd.f32 %v29, %v59
  %63 = vst [vmem:[#allocation2] sm:$0xff] %v61
  %64 = vst [vmem:[#allocation2 + $0x8] sm:$0xff] %v62
  // Predicated region
  $region18: #{forward.7} parent=0 // pred_check
    %p65 = pneg %p15
  $region19: #{forward.7} parent=0 // pred_check_branch
    %67 = sbr.rel (%p65) target = $region21
  $region20: #{forward.7} parent=0 // pred_region
    %v68 = vld [vmem:[#allocation2] sm:$0xff]
    %v69 = vld [vmem:[#allocation2 + $0x8] sm:$0xff]
    %v70 = vld [vmem:[%s2] sm:$0x1]
    %v72 = vperm.slane %v70, 0
    %v74 = vadd.f32 %v68, %v72
    %v75 = vadd.f32 %v69, %v72
    %v76 = vmax.f32 %v74, 0.0
    %v77 = vmax.f32 %v75, 0.0
    %78 = vst [vmem:[%s3] sm:$0xff] %v76
    %79 = vst [vmem:[%s3 + $0x8] sm:$0xff] %v77
  $region21: #{forward.7} parent=0 // pred_fallthru
    _
  // Predicated region
  $region22: #{forward.7} parent=0 // pred_check
    _
  $region23: #{forward.7} parent=0 // pred_check_branch
    %81 = sbr.rel (0) target = $region25
  $region24: #{forward.7} parent=0 // pred_region
    _
  $region25: #{forward.7} parent=0 // pred_fallthru
    _
  // Predicated region
  $region26: #{forward.7} parent=0 // pred_check
    _
  $region27: #{forward.7} parent=0 // pred_check_branch
    %83 = sbr.rel (0) target = $region29
  $region28: #{forward.7} parent=0 // pred_region
    _
  $region29: #{forward.7} parent=0 // pred_fallthru
    _

</llo_original>
